<compile_context>
chip_gen: v5e
topology: v5e:2x2
jax: 0.10.0
libtpu: 0.0.40
codegen_flags: <defaults>
</compile_context>

<pallas_src>
import functools

import jax
import jax.numpy as jnp
from jax.experimental import pallas as pl
from jax.experimental.pallas import tpu as pltpu


def _round_up(x: int, m: int) -> int:
    return ((x + m - 1) // m) * m


def actor_kernel(x_ref, w1_ref, b1_ref, w2_ref, b2_ref, w3_ref, b3_ref,
                 scale_ref, bias_ref, out_ref):
    # fc1 + relu (bf16 MXU inputs, f32 accumulate / VPU math)
    h1 = jnp.dot(x_ref[...], w1_ref[...], preferred_element_type=jnp.float32)
    h1 = jnp.maximum(h1 + b1_ref[...], 0.0)
    # fc2 + relu
    h2 = jnp.dot(h1.astype(jnp.bfloat16), w2_ref[...],
                 preferred_element_type=jnp.float32)
    h2 = jnp.maximum(h2 + b2_ref[...], 0.0)
    # fc_mu + tanh (tanh on the EUP)
    mu = jnp.dot(h2.astype(jnp.bfloat16), w3_ref[...],
                 preferred_element_type=jnp.float32)
    mu = jnp.tanh(mu + b3_ref[...])
    # rescale to action range (lane-dense padded output)
    out_ref[...] = mu * scale_ref[...] + bias_ref[...]


@functools.partial(jax.jit, static_argnames=("tile_b",))
def actor_forward(x, params, *, tile_b=256):
    """x: (B, obs_dim) float32.  params: dict of f32 weights/biases/scale/bias."""
    x = jnp.asarray(x, jnp.float32)
    B, obs_dim = x.shape
    H = params["w1"].shape[1]
    act_dim = params["w3"].shape[1]

    # Layout-friendly padding.
    obs_p = _round_up(obs_dim, 8)     # sublane dim of w1 / lane (K) dim of x
    act_p = _round_up(act_dim, 128)   # lane-dense output -> unmasked vector stores
    tile_b = min(tile_b, _round_up(B, 8))
    n_steps = pl.cdiv(B, tile_b)
    B_pad = n_steps * tile_b

    bf16 = jnp.bfloat16
    f32 = jnp.float32

    # Pad + cast once in the (jitted) wrapper; zero-padded rows/cols contribute zeros.
    xp = jnp.zeros((B_pad, obs_p), bf16).at[:B, :obs_dim].set(x.astype(bf16))
    w1 = jnp.zeros((obs_p, H), bf16).at[:obs_dim, :].set(params["w1"].astype(bf16))
    b1 = params["b1"].astype(f32)
    w2 = params["w2"].astype(bf16)
    b2 = params["b2"].astype(f32)
    w3 = jnp.zeros((H, act_p), bf16).at[:, :act_dim].set(params["w3"].astype(bf16))
    b3 = jnp.zeros((1, act_p), f32).at[:, :act_dim].set(params["b3"].astype(f32))
    scale = jnp.zeros((1, act_p), f32).at[:, :act_dim].set(
        params["action_scale"].astype(f32))
    bias = jnp.zeros((1, act_p), f32).at[:, :act_dim].set(
        params["action_bias"].astype(f32))

    # Advisory cost estimate for XLA's scheduler.
    cost = pl.CostEstimate(
        flops=2 * B_pad * (obs_p * H + H * H + H * act_p),
        transcendentals=B_pad * act_p,                       # tanh
        bytes_accessed=(xp.size * 2 + w1.size * 2 + w2.size * 2 + w3.size * 2
                        + (b1.size + b2.size + b3.size + scale.size + bias.size) * 4
                        + B_pad * act_p * 4),
    )

    tiled = lambda d: pl.BlockSpec((tile_b, d), lambda i: (i, 0))       # batch-tiled
    resident = lambda r, c: pl.BlockSpec((r, c), lambda i: (0, 0))      # stays in VMEM

    out = pl.pallas_call(
        actor_kernel,
        out_shape=jax.ShapeDtypeStruct((B_pad, act_p), f32),
        grid=(n_steps,),
        in_specs=[
            tiled(obs_p),              # x
            resident(obs_p, H),        # w1
            resident(1, H),            # b1
            resident(H, H),            # w2
            resident(1, H),            # b2
            resident(H, act_p),        # w3
            resident(1, act_p),        # b3
            resident(1, act_p),        # action_scale
            resident(1, act_p),        # action_bias
        ],
        out_specs=tiled(act_p),
        compiler_params=pltpu.CompilerParams(
            dimension_semantics=("parallel",)),
        cost_estimate=cost,
    )(xp, w1, b1, w2, b2, w3, b3, scale, bias)

    return out[:B, :act_dim]


def make_params(key, obs_dim, act_dim, hidden=256):
    """Deterministic synthetic init (PyTorch Linear default: U(-1/sqrt(fan_in), ...))."""
    ks = jax.random.split(key, 6)

    def linear(kw, kb, fan_in, fan_out):
        bound = 1.0 / jnp.sqrt(jnp.float32(fan_in))
        # stored as (in, out) == transpose of torch's (out, in)
        w = jax.random.uniform(kw, (fan_in, fan_out), jnp.float32, -bound, bound)
        b = jax.random.uniform(kb, (1, fan_out), jnp.float32, -bound, bound)
        return w, b

    w1, b1 = linear(ks[0], ks[1], obs_dim, hidden)
    w2, b2 = linear(ks[2], ks[3], hidden, hidden)
    w3, b3 = linear(ks[4], ks[5], hidden, act_dim)

    # Synthetic action space: low = -2, high = 2  =>  scale = 2, bias = 0
    action_scale = jnp.full((1, act_dim), 2.0, dtype=jnp.float32)
    action_bias = jnp.zeros((1, act_dim), dtype=jnp.float32)

    return dict(w1=w1, b1=b1, w2=w2, b2=b2, w3=w3, b3=b3,
                action_scale=action_scale, action_bias=action_bias)


def actor_reference(x, p):
    """Pure-JAX reference mirroring the kernel's bf16 MXU quantization (f32 accumulate)."""
    hi = jax.lax.Precision.HIGHEST
    bf = lambda a: a.astype(jnp.bfloat16).astype(jnp.float32)
    h1 = jax.nn.relu(jnp.dot(bf(x), bf(p["w1"]), precision=hi) + p["b1"])
    h2 = jax.nn.relu(jnp.dot(bf(h1), bf(p["w2"]), precision=hi) + p["b2"])
    mu = jnp.tanh(jnp.dot(bf(h2), bf(p["w3"]), precision=hi) + p["b3"])
    return mu * p["action_scale"] + p["action_bias"]


if __name__ == "__main__":
    key = jax.random.PRNGKey(0)
    k_param, k_x, k_xb = jax.random.split(key, 3)

    batch, obs_dim, act_dim = 2, 17, 6   # small MuJoCo-style env
    params = make_params(k_param, obs_dim, act_dim, hidden=256)

    # Tiny-batch case (single grid step, tile rounded up to 8 rows).
    x = jax.random.normal(k_x, (batch, obs_dim), dtype=jnp.float32)
    out = jax.block_until_ready(actor_forward(x, params))
    ref = actor_reference(x, params)
    assert out.shape == (batch, act_dim)
    assert jnp.allclose(out, ref, atol=5e-3, rtol=5e-3), "mismatch vs. JAX reference (B=2)"

    # Larger batch exercises the batch grid (3 steps of 128) + ragged padding.
    xb = jax.random.normal(k_xb, (300, obs_dim), dtype=jnp.float32)
    outb = jax.block_until_ready(actor_forward(xb, params, tile_b=128))
    refb = actor_reference(xb, params)
    assert outb.shape == (300, act_dim)
    assert jnp.allclose(outb, refb, atol=5e-3, rtol=5e-3), "mismatch vs. JAX reference (B=300)"

    print("KERNEL_OK")
</pallas_src>

<mosaic_0001>
module attributes {stable_mosaic.version = 11 : i64} {
  func.func @actor_kernel(%arg0: i32, %arg1: memref<8x24xbf16, #tpu.memory_space<vmem>>, %arg2: memref<24x256xbf16, #tpu.memory_space<vmem>>, %arg3: memref<1x256xf32, #tpu.memory_space<vmem>>, %arg4: memref<256x256xbf16, #tpu.memory_space<vmem>>, %arg5: memref<1x256xf32, #tpu.memory_space<vmem>>, %arg6: memref<256x128xbf16, #tpu.memory_space<vmem>>, %arg7: memref<1x128xf32, #tpu.memory_space<vmem>>, %arg8: memref<1x128xf32, #tpu.memory_space<vmem>>, %arg9: memref<1x128xf32, #tpu.memory_space<vmem>>, %arg10: memref<8x128xf32, #tpu.memory_space<vmem>>) attributes {dimension_semantics = [#tpu.dimension_semantics<parallel>], iteration_bounds = array<i64: 1>, scalar_prefetch = 0 : i64, scratch_operands = 0 : i64, tpu.core_type = #tpu.core_type<tc>, window_params = [{transform_indices = @transform_0, window_bounds = array<i64: 8, 24>}, {pipeline_mode = #tpu.pipeline_mode<synchronous>, transform_indices = @transform_1, window_bounds = array<i64: 24, 256>}, {pipeline_mode = #tpu.pipeline_mode<synchronous>, transform_indices = @transform_2, window_bounds = array<i64: 1, 256>}, {pipeline_mode = #tpu.pipeline_mode<synchronous>, transform_indices = @transform_3, window_bounds = array<i64: 256, 256>}, {pipeline_mode = #tpu.pipeline_mode<synchronous>, transform_indices = @transform_4, window_bounds = array<i64: 1, 256>}, {pipeline_mode = #tpu.pipeline_mode<synchronous>, transform_indices = @transform_5, window_bounds = array<i64: 256, 128>}, {pipeline_mode = #tpu.pipeline_mode<synchronous>, transform_indices = @transform_6, window_bounds = array<i64: 1, 128>}, {pipeline_mode = #tpu.pipeline_mode<synchronous>, transform_indices = @transform_7, window_bounds = array<i64: 1, 128>}, {pipeline_mode = #tpu.pipeline_mode<synchronous>, transform_indices = @transform_8, window_bounds = array<i64: 1, 128>}, {transform_indices = @transform_9, window_bounds = array<i64: 8, 128>}]} {
    %c0 = arith.constant 0 : index
    %c0_0 = arith.constant 0 : index
    %0 = vector.load %arg1[%c0, %c0_0] : memref<8x24xbf16, #tpu.memory_space<vmem>>, vector<8x24xbf16>
    %c0_1 = arith.constant 0 : index
    %c0_2 = arith.constant 0 : index
    %1 = vector.load %arg2[%c0_1, %c0_2] : memref<24x256xbf16, #tpu.memory_space<vmem>>, vector<24x256xbf16>
    %cst = arith.constant dense<0.000000e+00> : vector<8x256xf32>
    %2 = tpu.matmul %0, %1, %cst {dimension_numbers = #tpu.dot_dimension_numbers<[1], [0], [0], [1], [0, 0, 1, 1], [], []>} : vector<8x24xbf16>, vector<24x256xbf16>, vector<8x256xf32> -> vector<8x256xf32>
    %c0_3 = arith.constant 0 : index
    %c0_4 = arith.constant 0 : index
    %3 = vector.load %arg3[%c0_3, %c0_4] : memref<1x256xf32, #tpu.memory_space<vmem>>, vector<1x256xf32>
    %4 = vector.broadcast %3 : vector<1x256xf32> to vector<8x256xf32>
    %5 = arith.addf %2, %4 : vector<8x256xf32>
    %cst_5 = arith.constant 0.000000e+00 : f32
    %6 = vector.broadcast %cst_5 : f32 to vector<8x256xf32>
    %7 = arith.maximumf %5, %6 : vector<8x256xf32>
    %8 = arith.truncf %7 : vector<8x256xf32> to vector<8x256xbf16>
    %c0_6 = arith.constant 0 : index
    %c0_7 = arith.constant 0 : index
    %9 = vector.load %arg4[%c0_6, %c0_7] : memref<256x256xbf16, #tpu.memory_space<vmem>>, vector<256x256xbf16>
    %cst_8 = arith.constant dense<0.000000e+00> : vector<8x256xf32>
    %10 = tpu.matmul %8, %9, %cst_8 {dimension_numbers = #tpu.dot_dimension_numbers<[1], [0], [0], [1], [0, 0, 1, 1], [], []>} : vector<8x256xbf16>, vector<256x256xbf16>, vector<8x256xf32> -> vector<8x256xf32>
    %c0_9 = arith.constant 0 : index
    %c0_10 = arith.constant 0 : index
    %11 = vector.load %arg5[%c0_9, %c0_10] : memref<1x256xf32, #tpu.memory_space<vmem>>, vector<1x256xf32>
    %12 = vector.broadcast %11 : vector<1x256xf32> to vector<8x256xf32>
    %13 = arith.addf %10, %12 : vector<8x256xf32>
    %cst_11 = arith.constant 0.000000e+00 : f32
    %14 = vector.broadcast %cst_11 : f32 to vector<8x256xf32>
    %15 = arith.maximumf %13, %14 : vector<8x256xf32>
    %16 = arith.truncf %15 : vector<8x256xf32> to vector<8x256xbf16>
    %c0_12 = arith.constant 0 : index
    %c0_13 = arith.constant 0 : index
    %17 = vector.load %arg6[%c0_12, %c0_13] : memref<256x128xbf16, #tpu.memory_space<vmem>>, vector<256x128xbf16>
    %cst_14 = arith.constant dense<0.000000e+00> : vector<8x128xf32>
    %18 = tpu.matmul %16, %17, %cst_14 {dimension_numbers = #tpu.dot_dimension_numbers<[1], [0], [0], [1], [0, 0, 1, 1], [], []>} : vector<8x256xbf16>, vector<256x128xbf16>, vector<8x128xf32> -> vector<8x128xf32>
    %c0_15 = arith.constant 0 : index
    %c0_16 = arith.constant 0 : index
    %19 = vector.load %arg7[%c0_15, %c0_16] : memref<1x128xf32, #tpu.memory_space<vmem>>, vector<1x128xf32>
    %20 = vector.broadcast %19 : vector<1x128xf32> to vector<8x128xf32>
    %21 = arith.addf %18, %20 : vector<8x128xf32>
    %22 = math.tanh %21 : vector<8x128xf32>
    %c0_17 = arith.constant 0 : index
    %c0_18 = arith.constant 0 : index
    %23 = vector.load %arg8[%c0_17, %c0_18] : memref<1x128xf32, #tpu.memory_space<vmem>>, vector<1x128xf32>
    %24 = vector.broadcast %23 : vector<1x128xf32> to vector<8x128xf32>
    %25 = arith.mulf %22, %24 : vector<8x128xf32>
    %c0_19 = arith.constant 0 : index
    %c0_20 = arith.constant 0 : index
    %26 = vector.load %arg9[%c0_19, %c0_20] : memref<1x128xf32, #tpu.memory_space<vmem>>, vector<1x128xf32>
    %27 = vector.broadcast %26 : vector<1x128xf32> to vector<8x128xf32>
    %28 = arith.addf %25, %27 : vector<8x128xf32>
    %c0_21 = arith.constant 0 : index
    %c0_22 = arith.constant 0 : index
    %29 = vector.load %arg10[%c0_21, %c0_22] : memref<8x128xf32, #tpu.memory_space<vmem>>, vector<8x128xf32>
    tpu.vector_store %arg10[%c0_21, %c0_22], %28 {strides = array<i32>} : memref<8x128xf32, #tpu.memory_space<vmem>>, vector<8x128xf32>,
    return
  }
  func.func @transform_0(%arg0: i32) -> (i32, i32) {
    %c0_i32 = arith.constant 0 : i32
    %c0_i32_0 = arith.constant 0 : i32
    return %arg0, %c0_i32 : i32, i32
  }
  func.func @transform_1(%arg0: i32) -> (i32, i32) {
    %c0_i32 = arith.constant 0 : i32
    %c0_i32_0 = arith.constant 0 : i32
    %c0_i32_1 = arith.constant 0 : i32
    return %c0_i32, %c0_i32_0 : i32, i32
  }
  func.func @transform_2(%arg0: i32) -> (i32, i32) {
    %c0_i32 = arith.constant 0 : i32
    %c0_i32_0 = arith.constant 0 : i32
    %c0_i32_1 = arith.constant 0 : i32
    return %c0_i32, %c0_i32_0 : i32, i32
  }
  func.func @transform_3(%arg0: i32) -> (i32, i32) {
    %c0_i32 = arith.constant 0 : i32
    %c0_i32_0 = arith.constant 0 : i32
    %c0_i32_1 = arith.constant 0 : i32
    return %c0_i32, %c0_i32_0 : i32, i32
  }
  func.func @transform_4(%arg0: i32) -> (i32, i32) {
    %c0_i32 = arith.constant 0 : i32
    %c0_i32_0 = arith.constant 0 : i32
    %c0_i32_1 = arith.constant 0 : i32
    return %c0_i32, %c0_i32_0 : i32, i32
  }
  func.func @transform_5(%arg0: i32) -> (i32, i32) {
    %c0_i32 = arith.constant 0 : i32
    %c0_i32_0 = arith.constant 0 : i32
    %c0_i32_1 = arith.constant 0 : i32
    return %c0_i32, %c0_i32_0 : i32, i32
  }
  func.func @transform_6(%arg0: i32) -> (i32, i32) {
    %c0_i32 = arith.constant 0 : i32
    %c0_i32_0 = arith.constant 0 : i32
    %c0_i32_1 = arith.constant 0 : i32
    return %c0_i32, %c0_i32_0 : i32, i32
  }
  func.func @transform_7(%arg0: i32) -> (i32, i32) {
    %c0_i32 = arith.constant 0 : i32
    %c0_i32_0 = arith.constant 0 : i32
    %c0_i32_1 = arith.constant 0 : i32
    return %c0_i32, %c0_i32_0 : i32, i32
  }
  func.func @transform_8(%arg0: i32) -> (i32, i32) {
    %c0_i32 = arith.constant 0 : i32
    %c0_i32_0 = arith.constant 0 : i32
    %c0_i32_1 = arith.constant 0 : i32
    return %c0_i32, %c0_i32_0 : i32, i32
  }
  func.func @transform_9(%arg0: i32) -> (i32, i32) {
    %c0_i32 = arith.constant 0 : i32
    %c0_i32_0 = arith.constant 0 : i32
    return %arg0, %c0_i32 : i32, i32
  }
}

</mosaic_0001>

<llo_original>
// kernel: actor_forward.1
$region0: #{actor_forward.1}
  #allocation0 [shape = 'u32[]', space=smem, size = 0x4, offset = 0x4, fixed_abs, tag = 'smem constant byte address 0x4 - core index']
  #allocation1 [shape = 'u32[72,128]{1,0:T(1,128)}', space=vmem, size = 0x9000, scoped, tag = 'internal scratch']
  %s0 = inlined_call_operand.vmem [shape: bf16[8,24], index: 0, kind: input, shape index: {}]
  %s1 = inlined_call_operand.vmem [shape: bf16[24,256], index: 1, kind: input, shape index: {}]
  %s2 = inlined_call_operand.vmem [shape: f32[1,256], index: 2, kind: input, shape index: {}]
  %s3 = inlined_call_operand.vmem [shape: bf16[256,256], index: 3, kind: input, shape index: {}]
  %s4 = inlined_call_operand.vmem [shape: f32[1,256], index: 4, kind: input, shape index: {}]
  %s5 = inlined_call_operand.vmem [shape: bf16[256,128], index: 5, kind: input, shape index: {}]
  %s6 = inlined_call_operand.vmem [shape: f32[1,128], index: 6, kind: input, shape index: {}]
  %s7 = inlined_call_operand.vmem [shape: f32[1,128], index: 7, kind: input, shape index: {}]
  %s8 = inlined_call_operand.vmem [shape: f32[1,128], index: 8, kind: input, shape index: {}]
  %s9 = inlined_call_operand.vmem [shape: f32[8,128], index: 9, kind: output, shape index: {}]
  %s10 = sld [smem:[#allocation0]]
  $region46: #{actor_forward.1} parent=0
    _
  %s12 = ssub.s32 1, %s10
  %s13 = scalar_select 0, %s12, %s10
  // Predicated region
  $region2: #{actor_forward.1} parent=0 // pred_check
    _
  $region3: #{actor_forward.1} parent=0 // pred_check_branch
    %15 = sbr.rel (0) target = $region5
  $region4: #{actor_forward.1} parent=0 // pred_region
    _
  $region5: #{actor_forward.1} parent=0 // pred_fallthru
    _
  // Predicated region
  $region6: #{actor_forward.1} parent=0 // pred_check
    _
  $region7: #{actor_forward.1} parent=0 // pred_check_branch
    %17 = sbr.rel (0) target = $region9
  $region8: #{actor_forward.1} parent=0 // pred_region
    _
  $region9: #{actor_forward.1} parent=0 // pred_fallthru
    _
  // Predicated region
  $region10: #{actor_forward.1} parent=0 // pred_check
    _
  $region11: #{actor_forward.1} parent=0 // pred_check_branch
    %19 = sbr.rel (0) target = $region13
  $region12: #{actor_forward.1} parent=0 // pred_region
    _
  $region13: #{actor_forward.1} parent=0 // pred_fallthru
    _
  // Predicated region
  $region14: #{actor_forward.1} parent=0 // pred_check
    _
  $region15: #{actor_forward.1} parent=0 // pred_check_branch
    %21 = sbr.rel (0) target = $region17
  $region16: #{actor_forward.1} parent=0 // pred_region
    _
  $region17: #{actor_forward.1} parent=0 // pred_fallthru
    _
  // Predicated region
  $region18: #{actor_forward.1} parent=0 // pred_check
    _
  $region19: #{actor_forward.1} parent=0 // pred_check_branch
    %23 = sbr.rel (0) target = $region21
  $region20: #{actor_forward.1} parent=0 // pred_region
    _
  $region21: #{actor_forward.1} parent=0 // pred_fallthru
    _
  // Predicated region
  $region22: #{actor_forward.1} parent=0 // pred_check
    _
  $region23: #{actor_forward.1} parent=0 // pred_check_branch
    %25 = sbr.rel (0) target = $region25
  $region24: #{actor_forward.1} parent=0 // pred_region
    _
  $region25: #{actor_forward.1} parent=0 // pred_fallthru
    _
  // Predicated region
  $region26: #{actor_forward.1} parent=0 // pred_check
    _
  $region27: #{actor_forward.1} parent=0 // pred_check_branch
    %27 = sbr.rel (0) target = $region29
  $region28: #{actor_forward.1} parent=0 // pred_region
    _
  $region29: #{actor_forward.1} parent=0 // pred_fallthru
    _
  // Predicated region
  $region30: #{actor_forward.1} parent=0 // pred_check
    _
  $region31: #{actor_forward.1} parent=0 // pred_check_branch
    %29 = sbr.rel (0) target = $region33
  $region32: #{actor_forward.1} parent=0 // pred_region
    _
  $region33: #{actor_forward.1} parent=0 // pred_fallthru
    _
  // Predicated region
  $region34: #{actor_forward.1} parent=0 // pred_check
    _
  $region35: #{actor_forward.1} parent=0 // pred_check_branch
    %31 = sbr.rel (0) target = $region37
  $region36: #{actor_forward.1} parent=0 // pred_region
    _
  $region37: #{actor_forward.1} parent=0 // pred_fallthru
    _
  %v33 = vld [vmem:[%s0] sm:$0xf]
  %v34 = vld [vmem:[%s1] sm:$0xff]
  %v35 = vld [vmem:[%s1 + $0x8] sm:$0xff]
  %v36 = vld [vmem:[%s1 + $0x10] sm:$0xff]
  %v37 = vld [vmem:[%s2] sm:$0x3]
  %v39 = vperm.slane %v37, 0
  %v40 = vperm.slane %v37, 1
  %v46 = vunpack.c.l.b16 %v34
  %v47 = vunpack.c.h.b16 %v34
  %v48 = vunpack.c.l.b16 %v35
  %v49 = vunpack.c.h.b16 %v35
  %v50 = vunpack.c.l.b16 %v36
  %v51 = vunpack.c.h.b16 %v36
  %v52 = vpack.c.b16 %v48, %v46
  %v53 = vpack.c.b16 %v49, %v47
  %v54 = vpack.c.b16 %v50, %v50
  %v55 = vpack.c.b16 %v51, %v51
  %vm58 = vcmask 195584
  %v60 = vsel %vm58, %v33, 0
  %vm62 = vcmask 1043456
  %v64 = vsel %vm62, %v54, 0
  %v67 = vsel %vm62, %v55, 0
  %69 = vmatpush.bf16.msra.mxu0 0
  %70 = vmatpush.bf16.msra.mxu0 0
  %71 = vmatpush.bf16.msra.mxu0 0
  %72 = vmatpush.bf16.msra.mxu0 0
  %73 = vmatpush.bf16.msra.mxu0 0
  %74 = vmatpush.bf16.msra.mxu0 0
  %75 = vmatpush.bf16.msra.mxu0 %v64
  %76 = vmatpush.bf16.msra.mxu0 %v52
  %77 = vmatmul.bf16.gmra.mxu0 %v60
  %v78 = vpop.f32.mrf.mxu0
  %v79 = vadd.f32 %v39, %v78
  %v80 = vpop.f32.mrf.mxu0
  %81 = vdwg.mxu0
  %82 = vmatpush.bf16.msra.mxu0 0
  %83 = vmatpush.bf16.msra.mxu0 0
  %84 = vmatpush.bf16.msra.mxu0 0
  %85 = vmatpush.bf16.msra.mxu0 0
  %86 = vmatpush.bf16.msra.mxu0 0
  %87 = vmatpush.bf16.msra.mxu0 0
  %88 = vmatpush.bf16.msra.mxu0 %v67
  %89 = vmatpush.bf16.msra.mxu0 %v53
  %90 = vmatmul.bf16.gmra.mxu0 %v60
  %v91 = vpop.f32.mrf.mxu0
  %v92 = vadd.f32 %v40, %v91
  %v93 = vpop.f32.mrf.mxu0
  %94 = vdwg.mxu0
  %v95 = vmax.f32 %v79, 0.0
  %v96 = vmax.f32 %v92, 0.0
  %v97 = vpack.c.bf16 %v95, %v95
  %v98 = vpack.c.bf16 %v96, %v96
  %v99 = vld [vmem:[%s3] sm:$0xff]
  %v100 = vld [vmem:[%s3 + $0x8] sm:$0xff]
  %v101 = vld [vmem:[%s3 + $0x10] sm:$0xff]
  %v102 = vld [vmem:[%s3 + $0x18] sm:$0xff]
  %v103 = vld [vmem:[%s3 + $0x20] sm:$0xff]
  %v104 = vld [vmem:[%s3 + $0x28] sm:$0xff]
  %v105 = vld [vmem:[%s3 + $0x30] sm:$0xff]
  %v106 = vld [vmem:[%s3 + $0x38] sm:$0xff]
  %v107 = vld [vmem:[%s3 + $0x40] sm:$0xff]
  %v108 = vld [vmem:[%s3 + $0x48] sm:$0xff]
  %v109 = vld [vmem:[%s3 + $0x50] sm:$0xff]
  %v110 = vld [vmem:[%s3 + $0x58] sm:$0xff]
  %v111 = vld [vmem:[%s3 + $0x60] sm:$0xff]
  %v112 = vld [vmem:[%s3 + $0x68] sm:$0xff]
  %v113 = vld [vmem:[%s3 + $0x70] sm:$0xff]
  %v114 = vld [vmem:[%s3 + $0x78] sm:$0xff]
  %v115 = vld [vmem:[%s3 + $0x80] sm:$0xff]
  %v116 = vld [vmem:[%s3 + $0x88] sm:$0xff]
  %v117 = vld [vmem:[%s3 + $0x90] sm:$0xff]
  %v118 = vld [vmem:[%s3 + $0x98] sm:$0xff]
  %v119 = vld [vmem:[%s3 + $0xa0] sm:$0xff]
  %v120 = vld [vmem:[%s3 + $0xa8] sm:$0xff]
  %v121 = vld [vmem:[%s3 + $0xb0] sm:$0xff]
  %v122 = vld [vmem:[%s3 + $0xb8] sm:$0xff]
  %v123 = vld [vmem:[%s3 + $0xc0] sm:$0xff]
  %v124 = vld [vmem:[%s3 + $0xc8] sm:$0xff]
  %v125 = vld [vmem:[%s3 + $0xd0] sm:$0xff]
  %v126 = vld [vmem:[%s3 + $0xd8] sm:$0xff]
  %v127 = vld [vmem:[%s3 + $0xe0] sm:$0xff]
  %v128 = vld [vmem:[%s3 + $0xe8] sm:$0xff]
  %v129 = vld [vmem:[%s3 + $0xf0] sm:$0xff]
  %v130 = vld [vmem:[%s3 + $0xf8] sm:$0xff]
  %v131 = vld [vmem:[%s4] sm:$0x3]
  %v133 = vperm.slane %v131, 0
  %v134 = vperm.slane %v131, 1
  %v169 = vunpack.c.l.b16 %v99
  %v170 = vunpack.c.h.b16 %v99
  %v171 = vunpack.c.l.b16 %v100
  %v172 = vunpack.c.h.b16 %v100
  %v173 = vunpack.c.l.b16 %v101
  %v174 = vunpack.c.h.b16 %v101
  %v175 = vunpack.c.l.b16 %v102
  %v176 = vunpack.c.h.b16 %v102
  %v177 = vunpack.c.l.b16 %v103
  %v178 = vunpack.c.h.b16 %v103
  %v179 = vunpack.c.l.b16 %v104
  %v180 = vunpack.c.h.b16 %v104
  %v181 = vunpack.c.l.b16 %v105
  %v182 = vunpack.c.h.b16 %v105
  %v183 = vunpack.c.l.b16 %v106
  %v184 = vunpack.c.h.b16 %v106
  %v185 = vunpack.c.l.b16 %v107
  %v186 = vunpack.c.h.b16 %v107
  %v187 = vunpack.c.l.b16 %v108
  %v188 = vunpack.c.h.b16 %v108
  %v189 = vunpack.c.l.b16 %v109
  %v190 = vunpack.c.h.b16 %v109
  %v191 = vunpack.c.l.b16 %v110
  %v192 = vunpack.c.h.b16 %v110
  %v193 = vunpack.c.l.b16 %v111
  %v194 = vunpack.c.h.b16 %v111
  %v195 = vunpack.c.l.b16 %v112
  %v196 = vunpack.c.h.b16 %v112
  %v197 = vunpack.c.l.b16 %v113
  %v198 = vunpack.c.h.b16 %v113
  %v199 = vunpack.c.l.b16 %v114
  %v200 = vunpack.c.h.b16 %v114
  %v201 = vunpack.c.l.b16 %v115
  %v202 = vunpack.c.h.b16 %v115
  %v203 = vunpack.c.l.b16 %v116
  %v204 = vunpack.c.h.b16 %v116
  %v205 = vunpack.c.l.b16 %v117
  %v206 = vunpack.c.h.b16 %v117
  %v207 = vunpack.c.l.b16 %v118
  %v208 = vunpack.c.h.b16 %v118
  %v209 = vunpack.c.l.b16 %v119
  %v210 = vunpack.c.h.b16 %v119
  %v211 = vunpack.c.l.b16 %v120
  %v212 = vunpack.c.h.b16 %v120
  %v213 = vunpack.c.l.b16 %v121
  %v214 = vunpack.c.h.b16 %v121
  %v215 = vunpack.c.l.b16 %v122
  %v216 = vunpack.c.h.b16 %v122
  %v217 = vunpack.c.l.b16 %v123
  %v218 = vunpack.c.h.b16 %v123
  %v219 = vunpack.c.l.b16 %v124
  %v220 = vunpack.c.h.b16 %v124
  %v221 = vunpack.c.l.b16 %v125
  %v222 = vunpack.c.h.b16 %v125
  %v223 = vunpack.c.l.b16 %v126
  %v224 = vunpack.c.h.b16 %v126
  %v225 = vunpack.c.l.b16 %v127
  %v226 = vunpack.c.h.b16 %v127
  %v227 = vunpack.c.l.b16 %v128
  %v228 = vunpack.c.h.b16 %v128
  %v229 = vunpack.c.l.b16 %v129
  %v230 = vunpack.c.h.b16 %v129
  %v231 = vunpack.c.l.b16 %v130
  %v232 = vunpack.c.h.b16 %v130
  %v233 = vpack.c.b16 %v171, %v169
  %v234 = vpack.c.b16 %v172, %v170
  %v235 = vpack.c.b16 %v175, %v173
  %v236 = vpack.c.b16 %v176, %v174
  %v237 = vpack.c.b16 %v179, %v177
  %v238 = vpack.c.b16 %v180, %v178
  %v239 = vpack.c.b16 %v183, %v181
  %v240 = vpack.c.b16 %v184, %v182
  %v241 = vpack.c.b16 %v187, %v185
  %v242 = vpack.c.b16 %v188, %v186
  %v243 = vpack.c.b16 %v191, %v189
  %v244 = vpack.c.b16 %v192, %v190
  %v245 = vpack.c.b16 %v195, %v193
  %v246 = vpack.c.b16 %v196, %v194
  %v247 = vpack.c.b16 %v199, %v197
  %v248 = vpack.c.b16 %v200, %v198
  %v249 = vpack.c.b16 %v203, %v201
  %v250 = vpack.c.b16 %v204, %v202
  %v251 = vpack.c.b16 %v207, %v205
  %v252 = vpack.c.b16 %v208, %v206
  %v253 = vpack.c.b16 %v211, %v209
  %v254 = vpack.c.b16 %v212, %v210
  %v255 = vpack.c.b16 %v215, %v213
  %v256 = vpack.c.b16 %v216, %v214
  %v257 = vpack.c.b16 %v219, %v217
  %v258 = vpack.c.b16 %v220, %v218
  %v259 = vpack.c.b16 %v223, %v221
  %v260 = vpack.c.b16 %v224, %v222
  %v261 = vpack.c.b16 %v227, %v225
  %v262 = vpack.c.b16 %v228, %v226
  %v263 = vpack.c.b16 %v231, %v229
  %v264 = vpack.c.b16 %v232, %v230
  %297 = vmatpush.bf16.msra.mxu0 %v247
  %298 = vmatpush.bf16.msra.mxu0 %v245
  %299 = vmatpush.bf16.msra.mxu0 %v243
  %300 = vmatpush.bf16.msra.mxu0 %v241
  %301 = vmatpush.bf16.msra.mxu0 %v239
  %302 = vmatpush.bf16.msra.mxu0 %v237
  %303 = vmatpush.bf16.msra.mxu0 %v235
  %304 = vmatpush.bf16.msra.mxu0 %v233
  %305 = vmatmul.bf16.gmra.mxu0 %v97
  %v306 = vpop.f32.mrf.mxu0
  %v307 = vadd.f32 %v133, %v306
  %v308 = vpop.f32.mrf.mxu0
  %309 = vdwg.mxu0
  %310 = vmatpush.bf16.msra.mxu0 %v263
  %311 = vmatpush.bf16.msra.mxu0 %v261
  %312 = vmatpush.bf16.msra.mxu0 %v259
  %313 = vmatpush.bf16.msra.mxu0 %v257
  %314 = vmatpush.bf16.msra.mxu0 %v255
  %315 = vmatpush.bf16.msra.mxu0 %v253
  %316 = vmatpush.bf16.msra.mxu0 %v251
  %317 = vmatpush.bf16.msra.mxu0 %v249
  %318 = vmatmul.bf16.gmra.mxu0 %v98
  %v319 = vpop.f32.mrf.mxu0
  %v320 = vadd.f32 %v307, %v319
  %v321 = vpop.f32.mrf.mxu0
  %322 = vdwg.mxu0
  %323 = vmatpush.bf16.msra.mxu0 %v248
  %324 = vmatpush.bf16.msra.mxu0 %v246
  %325 = vmatpush.bf16.msra.mxu0 %v244
  %326 = vmatpush.bf16.msra.mxu0 %v242
  %327 = vmatpush.bf16.msra.mxu0 %v240
  %328 = vmatpush.bf16.msra.mxu0 %v238
  %329 = vmatpush.bf16.msra.mxu0 %v236
  %330 = vmatpush.bf16.msra.mxu0 %v234
  %331 = vmatmul.bf16.gmra.mxu0 %v97
  %v332 = vpop.f32.mrf.mxu0
  %v333 = vadd.f32 %v134, %v332
  %v334 = vpop.f32.mrf.mxu0
  %335 = vdwg.mxu0
  %336 = vmatpush.bf16.msra.mxu0 %v264
  %337 = vmatpush.bf16.msra.mxu0 %v262
  %338 = vmatpush.bf16.msra.mxu0 %v260
  %339 = vmatpush.bf16.msra.mxu0 %v258
  %340 = vmatpush.bf16.msra.mxu0 %v256
  %341 = vmatpush.bf16.msra.mxu0 %v254
  %342 = vmatpush.bf16.msra.mxu0 %v252
  %343 = vmatpush.bf16.msra.mxu0 %v250
  %344 = vmatmul.bf16.gmra.mxu0 %v98
  %v345 = vpop.f32.mrf.mxu0
  %v346 = vadd.f32 %v333, %v345
  %v347 = vpop.f32.mrf.mxu0
  %348 = vdwg.mxu0
  %v349 = vmax.f32 %v320, 0.0
  %v350 = vmax.f32 %v346, 0.0
  %v351 = vpack.c.bf16 %v349, %v349
  %v352 = vpack.c.bf16 %v350, %v350
  %v353 = vld [vmem:[%s5] sm:$0xf]
  %v354 = vld [vmem:[%s5 + $0x4] sm:$0xf]
  %v355 = vld [vmem:[%s5 + $0x8] sm:$0xf]
  %v356 = vld [vmem:[%s5 + $0xc] sm:$0xf]
  %v357 = vld [vmem:[%s5 + $0x10] sm:$0xf]
  %v358 = vld [vmem:[%s5 + $0x14] sm:$0xf]
  %v359 = vld [vmem:[%s5 + $0x18] sm:$0xf]
  %v360 = vld [vmem:[%s5 + $0x1c] sm:$0xf]
  %v361 = vld [vmem:[%s5 + $0x20] sm:$0xf]
  %v362 = vld [vmem:[%s5 + $0x24] sm:$0xf]
  %v363 = vld [vmem:[%s5 + $0x28] sm:$0xf]
  %v364 = vld [vmem:[%s5 + $0x2c] sm:$0xf]
  %v365 = vld [vmem:[%s5 + $0x30] sm:$0xf]
  %v366 = vld [vmem:[%s5 + $0x34] sm:$0xf]
  %v367 = vld [vmem:[%s5 + $0x38] sm:$0xf]
  %v368 = vld [vmem:[%s5 + $0x3c] sm:$0xf]
  %v369 = vld [vmem:[%s5 + $0x40] sm:$0xf]
  %v370 = vld [vmem:[%s5 + $0x44] sm:$0xf]
  %v371 = vld [vmem:[%s5 + $0x48] sm:$0xf]
  %v372 = vld [vmem:[%s5 + $0x4c] sm:$0xf]
  %v373 = vld [vmem:[%s5 + $0x50] sm:$0xf]
  %v374 = vld [vmem:[%s5 + $0x54] sm:$0xf]
  %v375 = vld [vmem:[%s5 + $0x58] sm:$0xf]
  %v376 = vld [vmem:[%s5 + $0x5c] sm:$0xf]
  %v377 = vld [vmem:[%s5 + $0x60] sm:$0xf]
  %v378 = vld [vmem:[%s5 + $0x64] sm:$0xf]
  %v379 = vld [vmem:[%s5 + $0x68] sm:$0xf]
  %v380 = vld [vmem:[%s5 + $0x6c] sm:$0xf]
  %v381 = vld [vmem:[%s5 + $0x70] sm:$0xf]
  %v382 = vld [vmem:[%s5 + $0x74] sm:$0xf]
  %v383 = vld [vmem:[%s5 + $0x78] sm:$0xf]
  %v384 = vld [vmem:[%s5 + $0x7c] sm:$0xf]
  %v385 = vld [vmem:[%s6] sm:$0x1]
  %v387 = vperm.slane %v385, 0
  %v421 = vunpack.c.l.b16 %v353
  %v422 = vunpack.c.l.b16 %v354
  %v423 = vunpack.c.l.b16 %v355
  %v424 = vunpack.c.l.b16 %v356
  %v425 = vunpack.c.l.b16 %v357
  %v426 = vunpack.c.l.b16 %v358
  %v427 = vunpack.c.l.b16 %v359
  %v428 = vunpack.c.l.b16 %v360
  %v429 = vunpack.c.l.b16 %v361
  %v430 = vunpack.c.l.b16 %v362
  %v431 = vunpack.c.l.b16 %v363
  %v432 = vunpack.c.l.b16 %v364
  %v433 = vunpack.c.l.b16 %v365
  %v434 = vunpack.c.l.b16 %v366
  %v435 = vunpack.c.l.b16 %v367
  %v436 = vunpack.c.l.b16 %v368
  %v437 = vunpack.c.l.b16 %v369
  %v438 = vunpack.c.l.b16 %v370
  %v439 = vunpack.c.l.b16 %v371
  %v440 = vunpack.c.l.b16 %v372
  %v441 = vunpack.c.l.b16 %v373
  %v442 = vunpack.c.l.b16 %v374
  %v443 = vunpack.c.l.b16 %v375
  %v444 = vunpack.c.l.b16 %v376
  %v445 = vunpack.c.l.b16 %v377
  %v446 = vunpack.c.l.b16 %v378
  %v447 = vunpack.c.l.b16 %v379
  %v448 = vunpack.c.l.b16 %v380
  %v449 = vunpack.c.l.b16 %v381
  %v450 = vunpack.c.l.b16 %v382
  %v451 = vunpack.c.l.b16 %v383
  %v452 = vunpack.c.l.b16 %v384
  %v453 = vpack.c.b16 %v422, %v421
  %v454 = vpack.c.b16 %v424, %v423
  %v455 = vpack.c.b16 %v426, %v425
  %v456 = vpack.c.b16 %v428, %v427
  %v457 = vpack.c.b16 %v430, %v429
  %v458 = vpack.c.b16 %v432, %v431
  %v459 = vpack.c.b16 %v434, %v433
  %v460 = vpack.c.b16 %v436, %v435
  %v461 = vpack.c.b16 %v438, %v437
  %v462 = vpack.c.b16 %v440, %v439
  %v463 = vpack.c.b16 %v442, %v441
  %v464 = vpack.c.b16 %v444, %v443
  %v465 = vpack.c.b16 %v446, %v445
  %v466 = vpack.c.b16 %v448, %v447
  %v467 = vpack.c.b16 %v450, %v449
  %v468 = vpack.c.b16 %v452, %v451
  %485 = vmatpush.bf16.msra.mxu0 %v460
  %486 = vmatpush.bf16.msra.mxu0 %v459
  %487 = vmatpush.bf16.msra.mxu0 %v458
  %488 = vmatpush.bf16.msra.mxu0 %v457
  %489 = vmatpush.bf16.msra.mxu0 %v456
  %490 = vmatpush.bf16.msra.mxu0 %v455
  %491 = vmatpush.bf16.msra.mxu0 %v454
  %492 = vmatpush.bf16.msra.mxu0 %v453
  %493 = vmatmul.bf16.gmra.mxu0 %v351
  %v494 = vpop.f32.mrf.mxu0
  %v495 = vadd.f32 %v387, %v494
  %v496 = vpop.f32.mrf.mxu0
  %497 = vdwg.mxu0
  %498 = vmatpush.bf16.msra.mxu0 %v468
  %499 = vmatpush.bf16.msra.mxu0 %v467
  %500 = vmatpush.bf16.msra.mxu0 %v466
  %501 = vmatpush.bf16.msra.mxu0 %v465
  %502 = vmatpush.bf16.msra.mxu0 %v464
  %503 = vmatpush.bf16.msra.mxu0 %v463
  %504 = vmatpush.bf16.msra.mxu0 %v462
  %505 = vmatpush.bf16.msra.mxu0 %v461
  %506 = vmatmul.bf16.gmra.mxu0 %v352
  %v507 = vpop.f32.mrf.mxu0
  %v508 = vadd.f32 %v495, %v507
  %v509 = vpop.f32.mrf.mxu0
  %510 = vdwg.mxu0
  %v511 = vtanh.pop %v508
  %v512 = vld [vmem:[%s7] sm:$0x1]
  %v514 = vperm.slane %v512, 0
  %v516 = vmul.f32 %v511, %v514
  %v517 = vld [vmem:[%s8] sm:$0x1]
  %v519 = vperm.slane %v517, 0
  %v521 = vadd.f32 %v516, %v519
  %522 = vst [vmem:[%s9] sm:$0xff] %v521
  // Predicated region
  $region38: #{actor_forward.1} parent=0 // pred_check
    _
  $region39: #{actor_forward.1} parent=0 // pred_check_branch
    %524 = sbr.rel (0) target = $region41
  $region40: #{actor_forward.1} parent=0 // pred_region
    _
  $region41: #{actor_forward.1} parent=0 // pred_fallthru
    _
  // Predicated region
  $region42: #{actor_forward.1} parent=0 // pred_check
    _
  $region43: #{actor_forward.1} parent=0 // pred_check_branch
    %526 = sbr.rel (0) target = $region45
  $region44: #{actor_forward.1} parent=0 // pred_region
    _
  $region45: #{actor_forward.1} parent=0 // pred_fallthru
    _

</llo_original>
